<compile_context>
chip_gen: v5e
topology: v5e:2x2
jax: 0.10.0
libtpu: 0.0.40
codegen_flags: <defaults>
</compile_context>

<pallas_src>
import functools

import jax
import jax.numpy as jnp
from jax.experimental import pallas as pl
from jax.experimental.pallas import tpu as pltpu


def _round_up(n, m):
    return ((n + m - 1) // m) * m


def _lighting_mlp_kernel(x_ref, w1_ref, b1_ref, w2_ref, b2_ref, out_ref,
                         *, compute_dtype, precision):
    # One batch tile: both GEMMs on the MXU (f32 accumulation), bias adds and ReLU on
    # the VPU in f32, all fused in VMEM.  Weights/biases are VMEM-resident across tiles.
    x = x_ref[...].astype(compute_dtype)                                   # (TB, in_dim)
    h = jnp.dot(x, w1_ref[...],
                preferred_element_type=jnp.float32, precision=precision)   # (TB, hidden) f32
    h = jnp.maximum(h + b1_ref[...], 0.0)                                  # bias + ReLU in f32
    y = jnp.dot(h.astype(compute_dtype), w2_ref[...],
                preferred_element_type=jnp.float32, precision=precision)   # (TB, out_dim) f32
    out_ref[...] = (y + b2_ref[...]).astype(out_ref.dtype)


def _pick_batch_tile(B, block_batch):
    """Batch-tile size.  Full-array tile for small B; 8-aligned tiles otherwise.

    VMEM budget note: the (tb, 9) x block and (tb, 64) hidden intermediate both pad to
    128 lanes in VMEM, so the per-row footprint is ~1.5-2 KiB (not 548 B).  tb=2048
    double-buffered is ~8-10 MiB: safely inside the scoped-VMEM default on v5e/v6e/v7x.
    """
    block_batch = max(8, _round_up(block_batch, 8))
    if B <= block_batch:
        if B >= 1024:
            # Give v7x's two TensorCores at least one tile each (no-op on v5e/v6e).
            return _round_up(pl.cdiv(B, 2), 8)
        return B          # tile == full batch dim: no 8-alignment needed, no ragged tile
    return block_batch    # multiple of 8; last tile may be ragged (Pallas masks OOB rows)


def lighting_mlp(x, w1, b1, w2, b2, *, block_batch=2048,
                 compute_dtype=jnp.bfloat16, out_dtype=None):
    """y = relu(x @ w1 + b1) @ w2 + b2.

    x:  (B, in_dim) f32
    w1: (in_dim, hidden), b1: (hidden,) or (1, hidden)
    w2: (hidden, out_dim), b2: (out_dim,) or (1, out_dim)
    compute_dtype: MXU operand dtype (bf16 default, f32 accumulate).  Use jnp.float32
                   for exact-f32 matmuls (precision=HIGHEST).
    out_dtype: output dtype (default: x.dtype).  bf16 halves the writeback stream.
    """
    B, in_dim = x.shape
    hidden = w1.shape[1]
    out_dim = w2.shape[1]
    assert w1.shape == (in_dim, hidden)
    assert w2.shape == (hidden, out_dim)
    out_dtype = x.dtype if out_dtype is None else out_dtype

    # Biases stay f32 (VPU epilogue in f32 on all generations; v5e has no bf16 VPU).
    b1 = b1.reshape(1, hidden).astype(jnp.float32)
    b2 = b2.reshape(1, out_dim).astype(jnp.float32)
    # Weights are tiny and VMEM-resident: cast once outside the kernel.
    w1c = w1.astype(compute_dtype)
    w2c = w2.astype(compute_dtype)
    precision = (jax.lax.Precision.HIGHEST
                 if jnp.dtype(compute_dtype) == jnp.dtype(jnp.float32) else None)

    tb = _pick_batch_tile(B, block_batch)
    grid = (pl.cdiv(B, tb),)   # ragged last tile handled by Pallas; no pad/slice passes

    out_isize = jnp.dtype(out_dtype).itemsize
    cost = pl.CostEstimate(
        flops=2 * B * (in_dim * hidden + hidden * out_dim),
        transcendentals=0,
        bytes_accessed=(4 * B * in_dim + out_isize * B * out_dim
                        + w1c.size * w1c.dtype.itemsize + w2c.size * w2c.dtype.itemsize
                        + 4 * (hidden + out_dim)),
    )

    kernel = functools.partial(_lighting_mlp_kernel,
                               compute_dtype=compute_dtype, precision=precision)

    return pl.pallas_call(
        kernel,
        out_shape=jax.ShapeDtypeStruct((B, out_dim), out_dtype),
        grid=grid,
        in_specs=[
            pl.BlockSpec((tb, in_dim), lambda i: (i, 0)),        # x: streamed per batch tile
            pl.BlockSpec((in_dim, hidden), lambda i: (0, 0)),    # W1: VMEM-resident
            pl.BlockSpec((1, hidden), lambda i: (0, 0)),         # b1: VMEM-resident
            pl.BlockSpec((hidden, out_dim), lambda i: (0, 0)),   # W2: VMEM-resident
            pl.BlockSpec((1, out_dim), lambda i: (0, 0)),        # b2: VMEM-resident
        ],
        out_specs=pl.BlockSpec((tb, out_dim), lambda i: (i, 0)),  # lane-dense (128) writeback
        compiler_params=pltpu.CompilerParams(
            # Batch tiles are independent (no cross-iteration accumulator): v7x can shard
            # the grid across both TensorCores; no-op on v5e/v6e.
            dimension_semantics=("parallel",),
        ),
        cost_estimate=cost,
    )(x, w1c, b1, w2c, b2)


def init_params(key, input_dim=9, hidden_dim=64, output_dim=128):
    """Deterministic init mirroring nn.Linear's U(-1/sqrt(fan_in), 1/sqrt(fan_in))."""
    k1, k2, k3, k4 = jax.random.split(key, 4)
    bound1 = 1.0 / jnp.sqrt(input_dim)
    bound2 = 1.0 / jnp.sqrt(hidden_dim)
    w1 = jax.random.uniform(k1, (input_dim, hidden_dim), jnp.float32, -bound1, bound1)
    b1 = jax.random.uniform(k2, (hidden_dim,), jnp.float32, -bound1, bound1)   # (H,)
    w2 = jax.random.uniform(k3, (hidden_dim, output_dim), jnp.float32, -bound2, bound2)
    b2 = jax.random.uniform(k4, (output_dim,), jnp.float32, -bound2, bound2)   # (H,)
    return w1, b1, w2, b2


def _reference(x, w1, b1, w2, b2):
    hp = jax.lax.Precision.HIGHEST
    h = jnp.maximum(jnp.dot(x, w1, precision=hp) + b1[None, :], 0.0)
    return jnp.dot(h, w2, precision=hp) + b2[None, :]


if __name__ == "__main__":
    key = jax.random.PRNGKey(0)
    k_x, k_p = jax.random.split(key)

    batch, input_dim, hidden_dim, output_dim = 16, 9, 64, 128
    x = jax.random.normal(k_x, (batch, input_dim), dtype=jnp.float32)
    w1, b1, w2, b2 = init_params(k_p, input_dim, hidden_dim, output_dim)
    ref = _reference(x, w1, b1, w2, b2)

    # 1) Default fast path: bf16 MXU operands, f32 accumulate, f32 output.
    out_bf16ops = jax.block_until_ready(lighting_mlp(x, w1, b1, w2, b2))
    assert out_bf16ops.shape == (batch, output_dim)
    assert jnp.allclose(out_bf16ops, ref, atol=5e-2, rtol=5e-2), \
        "bf16-operand path mismatch vs reference"

    # 2) Exact-f32 path (precision=HIGHEST operands): tight tolerance.
    out_f32 = jax.block_until_ready(
        lighting_mlp(x, w1, b1, w2, b2, compute_dtype=jnp.float32))
    assert jnp.allclose(out_f32, ref, atol=1e-5, rtol=1e-5), \
        "f32 path mismatch vs reference"

    # 3) Ragged last tile (B not a multiple of the tile): exercises the no-pad path.
    x_r = jax.random.normal(jax.random.PRNGKey(1), (20, input_dim), dtype=jnp.float32)
    out_r = jax.block_until_ready(
        lighting_mlp(x_r, w1, b1, w2, b2, block_batch=8, compute_dtype=jnp.float32))
    ref_r = _reference(x_r, w1, b1, w2, b2)
    assert out_r.shape == (20, output_dim)
    assert jnp.allclose(out_r, ref_r, atol=1e-5, rtol=1e-5), \
        "ragged-tile path mismatch vs reference"

    print("KERNEL_OK")
</pallas_src>

<mosaic_0001>
module attributes {stable_mosaic.version = 11 : i64} {
  func.func @_lighting_mlp_kernel(%arg0: i32, %arg1: memref<16x9xf32, #tpu.memory_space<vmem>>, %arg2: memref<9x64xbf16, #tpu.memory_space<vmem>>, %arg3: memref<1x64xf32, #tpu.memory_space<vmem>>, %arg4: memref<64x128xbf16, #tpu.memory_space<vmem>>, %arg5: memref<1x128xf32, #tpu.memory_space<vmem>>, %arg6: memref<16x128xf32, #tpu.memory_space<vmem>>) attributes {dimension_semantics = [#tpu.dimension_semantics<parallel>], iteration_bounds = array<i64: 1>, scalar_prefetch = 0 : i64, scratch_operands = 0 : i64, tpu.core_type = #tpu.core_type<tc>, window_params = [{transform_indices = @transform_0, window_bounds = array<i64: 16, 9>}, {pipeline_mode = #tpu.pipeline_mode<synchronous>, transform_indices = @transform_1, window_bounds = array<i64: 9, 64>}, {pipeline_mode = #tpu.pipeline_mode<synchronous>, transform_indices = @transform_2, window_bounds = array<i64: 1, 64>}, {pipeline_mode = #tpu.pipeline_mode<synchronous>, transform_indices = @transform_3, window_bounds = array<i64: 64, 128>}, {pipeline_mode = #tpu.pipeline_mode<synchronous>, transform_indices = @transform_4, window_bounds = array<i64: 1, 128>}, {transform_indices = @transform_5, window_bounds = array<i64: 16, 128>}]} {
    %c0 = arith.constant 0 : index
    %c0_0 = arith.constant 0 : index
    %0 = vector.load %arg1[%c0, %c0_0] : memref<16x9xf32, #tpu.memory_space<vmem>>, vector<16x9xf32>
    %1 = arith.truncf %0 : vector<16x9xf32> to vector<16x9xbf16>
    %c0_1 = arith.constant 0 : index
    %c0_2 = arith.constant 0 : index
    %2 = vector.load %arg2[%c0_1, %c0_2] : memref<9x64xbf16, #tpu.memory_space<vmem>>, vector<9x64xbf16>
    %cst = arith.constant dense<0.000000e+00> : vector<16x64xf32>
    %3 = tpu.matmul %1, %2, %cst {dimension_numbers = #tpu.dot_dimension_numbers<[1], [0], [0], [1], [0, 0, 1, 1], [], []>} : vector<16x9xbf16>, vector<9x64xbf16>, vector<16x64xf32> -> vector<16x64xf32>
    %c0_3 = arith.constant 0 : index
    %c0_4 = arith.constant 0 : index
    %4 = vector.load %arg3[%c0_3, %c0_4] : memref<1x64xf32, #tpu.memory_space<vmem>>, vector<1x64xf32>
    %5 = vector.broadcast %4 : vector<1x64xf32> to vector<16x64xf32>
    %6 = arith.addf %3, %5 : vector<16x64xf32>
    %cst_5 = arith.constant 0.000000e+00 : f32
    %7 = vector.broadcast %cst_5 : f32 to vector<16x64xf32>
    %8 = arith.maximumf %6, %7 : vector<16x64xf32>
    %9 = arith.truncf %8 : vector<16x64xf32> to vector<16x64xbf16>
    %c0_6 = arith.constant 0 : index
    %c0_7 = arith.constant 0 : index
    %10 = vector.load %arg4[%c0_6, %c0_7] : memref<64x128xbf16, #tpu.memory_space<vmem>>, vector<64x128xbf16>
    %cst_8 = arith.constant dense<0.000000e+00> : vector<16x128xf32>
    %11 = tpu.matmul %9, %10, %cst_8 {dimension_numbers = #tpu.dot_dimension_numbers<[1], [0], [0], [1], [0, 0, 1, 1], [], []>} : vector<16x64xbf16>, vector<64x128xbf16>, vector<16x128xf32> -> vector<16x128xf32>
    %c0_9 = arith.constant 0 : index
    %c0_10 = arith.constant 0 : index
    %12 = vector.load %arg5[%c0_9, %c0_10] : memref<1x128xf32, #tpu.memory_space<vmem>>, vector<1x128xf32>
    %13 = vector.broadcast %12 : vector<1x128xf32> to vector<16x128xf32>
    %14 = arith.addf %11, %13 : vector<16x128xf32>
    %c0_11 = arith.constant 0 : index
    %c0_12 = arith.constant 0 : index
    %15 = vector.load %arg6[%c0_11, %c0_12] : memref<16x128xf32, #tpu.memory_space<vmem>>, vector<16x128xf32>
    tpu.vector_store %arg6[%c0_11, %c0_12], %14 {strides = array<i32>} : memref<16x128xf32, #tpu.memory_space<vmem>>, vector<16x128xf32>,
    return
  }
  func.func @transform_0(%arg0: i32) -> (i32, i32) {
    %c0_i32 = arith.constant 0 : i32
    %c0_i32_0 = arith.constant 0 : i32
    return %arg0, %c0_i32 : i32, i32
  }
  func.func @transform_1(%arg0: i32) -> (i32, i32) {
    %c0_i32 = arith.constant 0 : i32
    %c0_i32_0 = arith.constant 0 : i32
    %c0_i32_1 = arith.constant 0 : i32
    return %c0_i32, %c0_i32_0 : i32, i32
  }
  func.func @transform_2(%arg0: i32) -> (i32, i32) {
    %c0_i32 = arith.constant 0 : i32
    %c0_i32_0 = arith.constant 0 : i32
    %c0_i32_1 = arith.constant 0 : i32
    return %c0_i32, %c0_i32_0 : i32, i32
  }
  func.func @transform_3(%arg0: i32) -> (i32, i32) {
    %c0_i32 = arith.constant 0 : i32
    %c0_i32_0 = arith.constant 0 : i32
    %c0_i32_1 = arith.constant 0 : i32
    return %c0_i32, %c0_i32_0 : i32, i32
  }
  func.func @transform_4(%arg0: i32) -> (i32, i32) {
    %c0_i32 = arith.constant 0 : i32
    %c0_i32_0 = arith.constant 0 : i32
    %c0_i32_1 = arith.constant 0 : i32
    return %c0_i32, %c0_i32_0 : i32, i32
  }
  func.func @transform_5(%arg0: i32) -> (i32, i32) {
    %c0_i32 = arith.constant 0 : i32
    %c0_i32_0 = arith.constant 0 : i32
    return %arg0, %c0_i32 : i32, i32
  }
}

</mosaic_0001>

<llo_original>
// kernel: tpu_custom_call.1
$region0: #{tpu_custom_call.1}
  #allocation0 [shape = 'u32[]', space=smem, size = 0x4, offset = 0x4, fixed_abs, tag = 'smem constant byte address 0x4 - core index']
  #allocation1 [shape = 'u32[72,128]{1,0:T(1,128)}', space=vmem, size = 0x9000, scoped, tag = 'internal scratch']
  %s0 = inlined_call_operand.hbm [shape: f32[16,9], index: 0, kind: input, shape index: {}]
  %s1 = inlined_call_operand.hbm [shape: bf16[9,64], index: 1, kind: input, shape index: {}]
  %s2 = inlined_call_operand.vmem [shape: f32[1,64], index: 2, kind: input, shape index: {}]
  %s3 = inlined_call_operand.hbm [shape: bf16[64,128], index: 3, kind: input, shape index: {}]
  %s4 = inlined_call_operand.vmem [shape: f32[1,128], index: 4, kind: input, shape index: {}]
  %s5 = inlined_call_operand.hbm [shape: f32[16,128], index: 5, kind: output, shape index: {}]
  %s6 = sld [smem:[#allocation0]]
  $region42: #{tpu_custom_call.1} parent=0
    _
  %s8 = ssub.s32 1, %s6
  %s9 = scalar_select 0, %s8, %s6
  $region1: #{tpu_custom_call.1} parent=0
    #allocation2 [shape = 'u8[8192]{0}', space=vmem, size = 0x2000, scoped, tag = 'input window, operand 0, single buffered']
    #allocation3 [shape = 's32[1]{0}', space=sflag, size = 0x4, scoped, tag = 'scoped memory for tpu_custom_call.1']
    #allocation4 [shape = 's32[1]{0}', space=sflag, size = 0x4, scoped, tag = 'scoped memory for tpu_custom_call.1']
    #allocation5 [shape = 'u8[4096]{0}', space=vmem, size = 0x1000, scoped, tag = 'input window, operand 1, single buffered']
    #allocation6 [shape = 's32[1]{0}', space=sflag, size = 0x4, scoped, tag = 'scoped memory for tpu_custom_call.1']
    #allocation7 [shape = 'u8[16384]{0}', space=vmem, size = 0x4000, scoped, tag = 'input window, operand 3, single buffered']
    #allocation8 [shape = 'u8[8192]{0}', space=vmem, size = 0x2000, scoped, tag = 'output window, operand 0, single buffered']
    %10 = vsyncpa [#allocation3], 0
    %11 = vsyncpa [#allocation6], 0
    %12 = vsyncpa [#allocation4], 0
    // Predicated region
    $region2: #{tpu_custom_call.1} parent=1 // pred_check
      _
    $region3: #{tpu_custom_call.1} parent=1 // pred_check_branch
      %14 = sbr.rel (0) target = $region5
    $region4: #{tpu_custom_call.1} parent=1 // pred_region
      %16 = vsyncadd [#allocation3], 0
      %s17 = sshll.u32 %s0, 4
      %s18 = int_to_ptr.hbm [resolvable:$true] %s17
      %s19 = sshll.u32 [#allocation2], 4
      %s20 = int_to_ptr.vmem [resolvable:$true] %s19
      %25 = dma.hbm_to_vmem [thread:$0]  %s18, 256, %s20, [#allocation3], 128, 128, 8
    $region5: #{tpu_custom_call.1} parent=1 // pred_fallthru
      _
    // Predicated region
    $region6: #{tpu_custom_call.1} parent=1 // pred_check
      _
    $region7: #{tpu_custom_call.1} parent=1 // pred_check_branch
      %27 = sbr.rel (0) target = $region9
    $region8: #{tpu_custom_call.1} parent=1 // pred_region
      %29 = vsyncadd [#allocation6], 0
      %s30 = sshll.u32 %s1, 4
      %s31 = int_to_ptr.hbm [resolvable:$true] %s30
      %s32 = sshll.u32 [#allocation5], 4
      %s33 = int_to_ptr.vmem [resolvable:$true] %s32
      %38 = dma.hbm_to_vmem [thread:$0]  %s31, 128, %s33, [#allocation6], 64, 64, 4
    $region9: #{tpu_custom_call.1} parent=1 // pred_fallthru
      _
    // Predicated region
    $region10: #{tpu_custom_call.1} parent=1 // pred_check
      _
    $region11: #{tpu_custom_call.1} parent=1 // pred_check_branch
      %40 = sbr.rel (0) target = $region13
    $region12: #{tpu_custom_call.1} parent=1 // pred_region
      _
    $region13: #{tpu_custom_call.1} parent=1 // pred_fallthru
      _
    // Predicated region
    $region14: #{tpu_custom_call.1} parent=1 // pred_check
      _
    $region15: #{tpu_custom_call.1} parent=1 // pred_check_branch
      %42 = sbr.rel (0) target = $region17
    $region16: #{tpu_custom_call.1} parent=1 // pred_region
      %44 = vsyncadd [#allocation6], 0
      %s45 = sshll.u32 %s3, 4
      %s46 = int_to_ptr.hbm [resolvable:$true] %s45
      %s47 = sshll.u32 [#allocation7], 4
      %s48 = int_to_ptr.vmem [resolvable:$true] %s47
      %53 = dma.hbm_to_vmem [thread:$0]  %s46, 512, %s48, [#allocation6], 64, 64, 4
    $region17: #{tpu_custom_call.1} parent=1 // pred_fallthru
      _
    // Predicated region
    $region18: #{tpu_custom_call.1} parent=1 // pred_check
      _
    $region19: #{tpu_custom_call.1} parent=1 // pred_check_branch
      %55 = sbr.rel (0) target = $region21
    $region20: #{tpu_custom_call.1} parent=1 // pred_region
      _
    $region21: #{tpu_custom_call.1} parent=1 // pred_fallthru
      _
    // Predicated region
    $region22: #{tpu_custom_call.1} parent=1 // pred_check
      _
    $region23: #{tpu_custom_call.1} parent=1 // pred_check_branch
      %57 = sbr.rel (0) target = $region25
    $region24: #{tpu_custom_call.1} parent=1 // pred_region
      %59 = dma.done [#allocation3], 256
    $region25: #{tpu_custom_call.1} parent=1 // pred_fallthru
      _
    // Predicated region
    $region26: #{tpu_custom_call.1} parent=1 // pred_check
      _
    $region27: #{tpu_custom_call.1} parent=1 // pred_check_branch
      %61 = sbr.rel (0) target = $region29
    $region28: #{tpu_custom_call.1} parent=1 // pred_region
      %63 = dma.done [#allocation6], 128
    $region29: #{tpu_custom_call.1} parent=1 // pred_fallthru
      _
    // Predicated region
    $region30: #{tpu_custom_call.1} parent=1 // pred_check
      _
    $region31: #{tpu_custom_call.1} parent=1 // pred_check_branch
      %65 = sbr.rel (0) target = $region33
    $region32: #{tpu_custom_call.1} parent=1 // pred_region
      %67 = dma.done [#allocation6], 512
    $region33: #{tpu_custom_call.1} parent=1 // pred_fallthru
      _
    %v69 = vld [vmem:[#allocation2] sm:$0xff]
    %v70 = vld [vmem:[#allocation2 + $0x8] sm:$0xff]
    %v71 = vpack.c.bf16 %v70, %v69
    %v72 = vld [vmem:[#allocation5] sm:$0xf]
    %v73 = vld [vmem:[#allocation5 + $0x4] sm:$0x1]
    %v74 = vld [vmem:[%s2] sm:$0x1]
    %v76 = vperm.slane %v74, 0
    %v80 = vunpack.c.l.b16 %v72
    %v81 = vunpack.c.l.b16 %v73
    %v82 = vpack.c.b16 %v81, %v80
    %vm83 = vcmask 72704
    %v85 = vsel %vm83, %v71, 0
    %vm87 = vcmask 1043456
    %vm88 = vcmask 1044480
    %v89 = vsel %vm87, 4294967295, 65535
    %v90 = vsel %vm88, %v89, 0
    %v92 = vand.u32 %v82, %v90
    %94 = vmatpush.bf16.msra.mxu0 0
    %95 = vmatpush.bf16.msra.mxu0 0
    %96 = vmatpush.bf16.msra.mxu0 0
    %97 = vmatpush.bf16.msra.mxu0 0
    %98 = vmatpush.bf16.msra.mxu0 0
    %99 = vmatpush.bf16.msra.mxu0 0
    %100 = vmatpush.bf16.msra.mxu0 0
    %101 = vmatpush.bf16.msra.mxu0 %v92
    %102 = vmatmul.bf16.gmra.mxu0 %v85
    %v103 = vpop.f32.mrf.mxu0
    %v104 = vadd.f32 %v76, %v103
    %v105 = vpop.f32.mrf.mxu0
    %v106 = vadd.f32 %v76, %v105
    %107 = vdwg.mxu0
    %v108 = vmax.f32 %v104, 0.0
    %v109 = vmax.f32 %v106, 0.0
    %v110 = vpack.c.bf16 %v109, %v108
    %v111 = vld [vmem:[#allocation7] sm:$0xf]
    %v112 = vld [vmem:[#allocation7 + $0x4] sm:$0xf]
    %v113 = vld [vmem:[#allocation7 + $0x8] sm:$0xf]
    %v114 = vld [vmem:[#allocation7 + $0xc] sm:$0xf]
    %v115 = vld [vmem:[#allocation7 + $0x10] sm:$0xf]
    %v116 = vld [vmem:[#allocation7 + $0x14] sm:$0xf]
    %v117 = vld [vmem:[#allocation7 + $0x18] sm:$0xf]
    %v118 = vld [vmem:[#allocation7 + $0x1c] sm:$0xf]
    %v119 = vld [vmem:[%s4] sm:$0x1]
    %v121 = vperm.slane %v119, 0
    %v131 = vunpack.c.l.b16 %v111
    %v132 = vunpack.c.l.b16 %v112
    %v133 = vunpack.c.l.b16 %v113
    %v134 = vunpack.c.l.b16 %v114
    %v135 = vunpack.c.l.b16 %v115
    %v136 = vunpack.c.l.b16 %v116
    %v137 = vunpack.c.l.b16 %v117
    %v138 = vunpack.c.l.b16 %v118
    %v139 = vpack.c.b16 %v132, %v131
    %v140 = vpack.c.b16 %v134, %v133
    %v141 = vpack.c.b16 %v136, %v135
    %v142 = vpack.c.b16 %v138, %v137
    %vm147 = vcmask 523264
    %v149 = vsel %vm147, %v110, 0
    %151 = vmatpush.bf16.msra.mxu0 0
    %152 = vmatpush.bf16.msra.mxu0 0
    %153 = vmatpush.bf16.msra.mxu0 0
    %154 = vmatpush.bf16.msra.mxu0 0
    %155 = vmatpush.bf16.msra.mxu0 %v142
    %156 = vmatpush.bf16.msra.mxu0 %v141
    %157 = vmatpush.bf16.msra.mxu0 %v140
    %158 = vmatpush.bf16.msra.mxu0 %v139
    %159 = vmatmul.bf16.gmra.mxu0 %v149
    %v160 = vpop.f32.mrf.mxu0
    %v161 = vadd.f32 %v121, %v160
    %v162 = vpop.f32.mrf.mxu0
    %v163 = vadd.f32 %v121, %v162
    %164 = vdwg.mxu0
    %165 = vst [vmem:[#allocation8] sm:$0xff] %v161
    %166 = vst [vmem:[#allocation8 + $0x8] sm:$0xff] %v163
    // Predicated region
    $region34: #{tpu_custom_call.1} parent=1 // pred_check
      _
    $region35: #{tpu_custom_call.1} parent=1 // pred_check_branch
      %168 = sbr.rel (0) target = $region37
    $region36: #{tpu_custom_call.1} parent=1 // pred_region
      %170 = vsyncadd [#allocation4], 0
      %s171 = sshll.u32 [#allocation8], 4
      %s172 = int_to_ptr.vmem [resolvable:$true] %s171
      %s173 = sshll.u32 %s5, 4
      %s174 = int_to_ptr.hbm [resolvable:$true] %s173
      %179 = dma.vmem_to_hbm [thread:$0]  %s172, 256, %s174, [#allocation4], 128, 128, 8
    $region37: #{tpu_custom_call.1} parent=1 // pred_fallthru
      _
    // Predicated region
    $region38: #{tpu_custom_call.1} parent=1 // pred_check
      _
    $region39: #{tpu_custom_call.1} parent=1 // pred_check_branch
      %181 = sbr.rel (0) target = $region41
    $region40: #{tpu_custom_call.1} parent=1 // pred_region
      %183 = dma.done [#allocation4], 256
    $region41: #{tpu_custom_call.1} parent=1 // pred_fallthru
      _
    %184 = vsyncpa [#allocation3], 1
    %185 = vsyncpa [#allocation6], 1
    %186 = vsyncpa [#allocation4], 1

</llo_original>
